<compile_context>
chip_gen: v6e
topology: v6e:2x2x1
jax: 0.10.0
libtpu: 0.0.40
codegen_flags: <defaults>
</compile_context>

<pallas_src>
import functools

import jax
import jax.numpy as jnp
from jax import lax
from jax.experimental import pallas as pl
from jax.experimental.pallas import tpu as pltpu


def _round_up(x: int, m: int) -> int:
    return (x + m - 1) // m * m


def _largest_divisor_le(n: int, cap: int) -> int:
    cap = max(1, min(cap, n))
    for d in range(cap, 0, -1):
        if n % d == 0:
            return d
    return 1


def _label_attention_kernel(x_ref, mask_ref, q_ref, out_ref, *,
                            block_b, seq, mxu_dtype, approx):
    # x_ref:    (block_b, seq, H)  original dtype (f32), cast to MXU dtype in VMEM
    # mask_ref: (block_b, 1, seq)  f32, 1.0 = attend / 0.0 = masked
    # q_ref:    (tl, H)            MXU dtype  (hoisted label_emb @ W_key)
    # out_ref:  (block_b, tl, H)   f32
    q = q_ref[...]                                          # (tl, H)
    x = x_ref[...].astype(mxu_dtype)                        # (block_b, seq, H)
    h = x.shape[-1]
    x2 = x.reshape(block_b * seq, h)                        # layout-free: seq % 8 == 0

    # Fused QK^T for the whole batch tile: one MXU call with N = block_b*seq,
    # RHS (q) pushed once -> amortizes fill/drain across the batch tile.
    scores_all = lax.dot_general(
        q, x2,
        dimension_numbers=(((1,), (1,)), ((), ())),
        preferred_element_type=jnp.float32)                 # (tl, block_b*seq) f32

    neg_inf = jnp.float32(-jnp.inf)
    for b in range(block_b):                                # static loop, block_b <= 8
        s = scores_all[:, b * seq:(b + 1) * seq]            # (tl, seq) static lane slice
        keep = mask_ref[b] > 0.0                            # (1, seq) broadcasts over tl
        s = jnp.where(keep, s, neg_inf)
        m = jnp.max(s, axis=-1, keepdims=True)
        p = jnp.exp(s - m)
        denom = jnp.sum(p, axis=-1, keepdims=True)
        attn = (p * pl.reciprocal(denom, approx=approx)).astype(mxu_dtype)
        out_ref[b] = jnp.dot(
            attn, x[b], preferred_element_type=jnp.float32).astype(out_ref.dtype)


def label_attention(inputs, masks, key_weight, label_embedding, *,
                    compute_dtype=jnp.bfloat16, label_tile=None, batch_tile=None):
    """Pallas implementation of LabelAttention.forward.

    inputs:          (B, S, H) float32
    masks:           (B, 1, S) (or (B, S)) bool / 0-1; True = attend
    key_weight:      (H, H)    float32, nn.Linear weight (y = x @ W^T)
    label_embedding: (L, H)    float32
    returns:         (B, L, H) float32
    """
    B, S, H = inputs.shape
    L = label_embedding.shape[0]
    if masks.ndim == 2:
        masks = masks[:, None, :]
    assert masks.shape == (B, 1, S), f"unexpected mask shape {masks.shape}"

    # ---- hoisted, batch-invariant projection (tiny) -----------------------------
    q = jnp.dot(label_embedding.astype(jnp.float32),
                key_weight.astype(jnp.float32),
                preferred_element_type=jnp.float32)              # (L, H)

    # ---- sequence axis: pad only if not sublane-aligned (rare) -------------------
    s_k = _round_up(S, 8)
    if s_k != S:
        x = jnp.pad(inputs, ((0, 0), (0, s_k - S), (0, 0)))
        maskf = jnp.pad(masks.astype(jnp.float32), ((0, 0), (0, 0), (0, s_k - S)))
    else:
        x = inputs                                               # no copy, original dtype
        maskf = masks.astype(jnp.float32)                        # (B,1,S): negligible

    # ---- label tiling -------------------------------------------------------------
    if label_tile is None:
        tl = L if L <= 256 else 256
    else:
        tl = max(1, min(int(label_tile), L))
    if tl != L:
        tl = max(8, (tl // 8) * 8)          # tiled label blocks must be 8-aligned
    l_pad = _round_up(L, tl)
    if l_pad != L:
        qp = jnp.zeros((l_pad, H), compute_dtype).at[:L].set(q.astype(compute_dtype))
    else:
        qp = q.astype(compute_dtype)

    # ---- generation-aware VMEM budget & batch tile --------------------------------
    try:
        vmem_cap = int(getattr(pltpu.get_tpu_info(), "vmem_capacity_bytes", 64 << 20))
    except Exception:  # pragma: no cover - conservative fallback (v7x per-core)
        vmem_cap = 64 << 20
    budget = (vmem_cap * 3) // 4            # ~48 MiB on v7x, ~96 MiB on v5e/v6e

    x_bytes = jnp.dtype(x.dtype).itemsize
    c_bytes = jnp.dtype(compute_dtype).itemsize

    def _footprint(tb):
        x_tile = tb * _round_up(s_k, 8) * _round_up(H, 128) * x_bytes
        mask_tile = tb * 8 * _round_up(s_k, 128) * 4
        q_tile = _round_up(tl, 8) * _round_up(H, 128) * c_bytes
        out_tile = tb * _round_up(tl, 8) * _round_up(H, 128) * 4
        x_cast = tb * _round_up(s_k, 8) * _round_up(H, 128) * c_bytes   # in-kernel cast
        scores = _round_up(tl, 8) * _round_up(tb * s_k, 128) * 4        # fused QK^T
        sm_tmp = 3 * _round_up(tl, 8) * _round_up(s_k, 128) * 4         # softmax temps
        return (2 * (x_tile + mask_tile + q_tile + out_tile)            # double-buffered
                + x_cast + scores + sm_tmp + (4 << 20))                 # + headroom

    if batch_tile is None:
        # prefer >=2 batch tiles so a v7x megacore shards disjoint x streams over B
        cap = min(8, max(1, B // 2)) if B >= 2 else 1
    else:
        cap = max(1, int(batch_tile))
    tb = _largest_divisor_le(B, cap)
    while tb > 1 and _footprint(tb) > budget:
        tb = _largest_divisor_le(B, tb - 1)
    if _footprint(tb) > budget:
        # TODO(synk): flash-style S tiling for very long sequences.
        raise ValueError(
            f"label_attention: a single (S={S}, H={H}) row does not fit the "
            f"{budget // (1 << 20)} MiB VMEM budget; needs an S-tiled kernel.")
    vmem_limit = int(budget)

    # ---- grid & specs --------------------------------------------------------------
    n_b, n_l = B // tb, l_pad // tl
    l_sem = "arbitrary" if n_b > 1 else "parallel"

    grid_spec = pltpu.PrefetchScalarGridSpec(
        num_scalar_prefetch=0,
        grid=(n_b, n_l),
        in_specs=[
            pl.BlockSpec((tb, s_k, H), lambda bi, li: (bi, 0, 0)),  # x (resident over li)
            pl.BlockSpec((tb, 1, s_k), lambda bi, li: (bi, 0, 0)),  # 0/1 mask
            pl.BlockSpec((tl, H), lambda bi, li: (li, 0)),          # q = label_emb @ W
        ],
        out_specs=pl.BlockSpec((tb, tl, H), lambda bi, li: (bi, li, 0)),
    )

    kernel = functools.partial(
        _label_attention_kernel,
        block_b=tb, seq=s_k, mxu_dtype=compute_dtype,
        approx=(jnp.dtype(compute_dtype) != jnp.dtype(jnp.float32)))

    out = pl.pallas_call(
        kernel,
        out_shape=jax.ShapeDtypeStruct((B, l_pad, H), jnp.float32),
        grid_spec=grid_spec,
        compiler_params=pltpu.CompilerParams(
            dimension_semantics=("parallel", l_sem),
            vmem_limit_bytes=vmem_limit,
        ),
    )(x, maskf, qp)

    return out if l_pad == L else out[:, :L, :]


def _reference(inputs, masks, key_weight, label_embedding):
    """Pure-JAX reference mirroring the PyTorch forward exactly."""
    key = jnp.einsum("bsh,kh->bsk", inputs, key_weight)         # key_layer(inputs)
    scores = jnp.einsum("lk,bsk->bls", label_embedding, key)    # bmm(label_emb, key^T)
    scores = jnp.where(masks, scores, -jnp.inf)                 # masked_fill(~mask, -inf)
    attn = jax.nn.softmax(scores, axis=-1)
    return jnp.einsum("bls,bsh->blh", attn, inputs)             # bmm(attn, inputs)


if __name__ == "__main__":
    B, S, H, L = 2, 8, 32, 4

    key0 = jax.random.PRNGKey(0)
    k_x, k_mask, k_wk, k_lab = jax.random.split(key0, 4)

    inputs = jax.random.normal(k_x, (B, S, H), dtype=jnp.float32)

    # masks: (B, 1, S); guarantee at least one unmasked position per row
    masks = jax.random.bernoulli(k_mask, p=0.8, shape=(B, 1, S))
    masks = masks.at[:, :, 0].set(True)

    # Xavier-uniform-ish key layer weight (deterministic, synthetic)
    limit = (6.0 / (H + H)) ** 0.5
    key_weight = jax.random.uniform(k_wk, (H, H), minval=-limit, maxval=limit,
                                    dtype=jnp.float32)

    # Xavier-normal-ish label embedding (deterministic, synthetic)
    std = (2.0 / (L + H)) ** 0.5
    label_embedding = std * jax.random.normal(k_lab, (L, H), dtype=jnp.float32)

    ref = _reference(inputs, masks, key_weight, label_embedding)

    # f32 path (exact reciprocal): should match the reference tightly.
    out_f32 = label_attention(inputs, masks, key_weight, label_embedding,
                              compute_dtype=jnp.float32)
    out_f32 = jax.block_until_ready(out_f32)
    assert out_f32.shape == (B, L, H)
    assert jnp.allclose(out_f32, ref, atol=2e-3, rtol=2e-3), "f32 kernel mismatch"

    # f32 path with an explicit batch tile of 2: exercises the fused QK^T + static loop.
    out_f32b = label_attention(inputs, masks, key_weight, label_embedding,
                               compute_dtype=jnp.float32, batch_tile=2)
    out_f32b = jax.block_until_ready(out_f32b)
    assert out_f32b.shape == (B, L, H)
    assert jnp.allclose(out_f32b, ref, atol=2e-3, rtol=2e-3), "f32 (tb=2) kernel mismatch"

    # default bf16 MXU path: tolerance appropriate for bf16 streaming operands.
    out = label_attention(inputs, masks, key_weight, label_embedding)
    out = jax.block_until_ready(out)
    assert out.shape == (B, L, H)
    assert jnp.allclose(out, ref, atol=1e-1, rtol=1e-1), "bf16 kernel mismatch"

    print("KERNEL_OK")
</pallas_src>

<mosaic_0001>
module attributes {stable_mosaic.version = 11 : i64} {
  func.func @_label_attention_kernel(%arg0: i32, %arg1: i32, %arg2: memref<1x8x32xf32, #tpu.memory_space<vmem>>, %arg3: memref<1x1x8xf32, #tpu.memory_space<vmem>>, %arg4: memref<4x32xf32, #tpu.memory_space<vmem>>, %arg5: memref<1x4x32xf32, #tpu.memory_space<vmem>>) attributes {dimension_semantics = [#tpu.dimension_semantics<parallel>, #tpu.dimension_semantics<arbitrary>], iteration_bounds = array<i64: 2, 1>, scalar_prefetch = 0 : i64, scratch_operands = 0 : i64, tpu.core_type = #tpu.core_type<tc>, window_params = [{transform_indices = @transform_0, window_bounds = array<i64: 1, 8, 32>}, {transform_indices = @transform_1, window_bounds = array<i64: 1, 1, 8>}, {transform_indices = @transform_2, window_bounds = array<i64: 4, 32>}, {transform_indices = @transform_3, window_bounds = array<i64: 1, 4, 32>}]} {
    %c0 = arith.constant 0 : index
    %c0_0 = arith.constant 0 : index
    %0 = vector.load %arg4[%c0, %c0_0] : memref<4x32xf32, #tpu.memory_space<vmem>>, vector<4x32xf32>
    %c0_1 = arith.constant 0 : index
    %c0_2 = arith.constant 0 : index
    %c0_3 = arith.constant 0 : index
    %1 = vector.load %arg2[%c0_1, %c0_2, %c0_3] : memref<1x8x32xf32, #tpu.memory_space<vmem>>, vector<1x8x32xf32>
    %2 = vector.shape_cast %1 : vector<1x8x32xf32> to vector<8x32xf32>
    %cst = arith.constant dense<0.000000e+00> : vector<4x8xf32>
    %3 = tpu.matmul %0, %2, %cst {dimension_numbers = #tpu.dot_dimension_numbers<[1], [1], [0], [0], [0, 0, 1, 0], [], []>} : vector<4x32xf32>, vector<8x32xf32>, vector<4x8xf32> -> vector<4x8xf32>
    %c0_4 = arith.constant 0 : index
    %c0_5 = arith.constant 0 : index
    %c0_6 = arith.constant 0 : index
    %4 = vector.load %arg3[%c0_4, %c0_5, %c0_6] : memref<1x1x8xf32, #tpu.memory_space<vmem>>, vector<1x1x8xf32>
    %5 = vector.shape_cast %4 : vector<1x1x8xf32> to vector<1x8xf32>
    %cst_7 = arith.constant 0.000000e+00 : f32
    %6 = vector.broadcast %cst_7 : f32 to vector<1x8xf32>
    %7 = arith.cmpf ogt, %5, %6 : vector<1x8xf32>
    %cst_8 = arith.constant 0xFF800000 : f32
    %8 = vector.shape_cast %7 : vector<1x8xi1> to vector<1x8xi1>
    %9 = vector.broadcast %8 : vector<1x8xi1> to vector<4x8xi1>
    %10 = vector.broadcast %cst_8 : f32 to vector<4x8xf32>
    %11 = arith.select %9, %3, %10 : vector<4x8xi1>, vector<4x8xf32>
    %cst_9 = arith.constant dense<0xFF800000> : vector<4xf32>
    %12 = vector.multi_reduction <maximumf>, %11, %cst_9 [1] : vector<4x8xf32> to vector<4xf32>
    %13 = vector.shape_cast %12 : vector<4xf32> to vector<4x1xf32>
    %14 = vector.broadcast %13 : vector<4x1xf32> to vector<4x8xf32>
    %15 = arith.subf %11, %14 : vector<4x8xf32>
    %16 = math.exp %15 : vector<4x8xf32>
    %cst_10 = arith.constant dense<0.000000e+00> : vector<4xf32>
    %17 = vector.multi_reduction <add>, %16, %cst_10 [1] : vector<4x8xf32> to vector<4xf32>
    %18 = vector.shape_cast %17 : vector<4xf32> to vector<4x1xf32>
    %19 = tpu.reciprocal %18 : vector<4x1xf32> -> vector<4x1xf32>
    %20 = vector.broadcast %19 : vector<4x1xf32> to vector<4x8xf32>
    %21 = arith.mulf %16, %20 : vector<4x8xf32>
    %22 = vector.shape_cast %1 : vector<1x8x32xf32> to vector<8x32xf32>
    %cst_11 = arith.constant dense<0.000000e+00> : vector<4x32xf32>
    %23 = tpu.matmul %21, %22, %cst_11 {dimension_numbers = #tpu.dot_dimension_numbers<[1], [0], [0], [1], [0, 0, 1, 1], [], []>} : vector<4x8xf32>, vector<8x32xf32>, vector<4x32xf32> -> vector<4x32xf32>
    %c0_12 = arith.constant 0 : index
    %c0_13 = arith.constant 0 : index
    %c0_14 = arith.constant 0 : index
    %24 = vector.load %arg5[%c0_12, %c0_13, %c0_14] : memref<1x4x32xf32, #tpu.memory_space<vmem>>, vector<1x4x32xf32>
    %25 = vector.shape_cast %24 : vector<1x4x32xf32> to vector<4x32xf32>
    %26 = vector.shape_cast %23 : vector<4x32xf32> to vector<1x4x32xf32>
    tpu.vector_store %arg5[%c0_12, %c0_13, %c0_14], %26 {strides = array<i32>} : memref<1x4x32xf32, #tpu.memory_space<vmem>>, vector<1x4x32xf32>,
    return
  }
  func.func @transform_0(%arg0: i32, %arg1: i32) -> (i32, i32, i32) {
    %c0_i32 = arith.constant 0 : i32
    %c0_i32_0 = arith.constant 0 : i32
    %c0_i32_1 = arith.constant 0 : i32
    return %arg0, %c0_i32, %c0_i32_0 : i32, i32, i32
  }
  func.func @transform_1(%arg0: i32, %arg1: i32) -> (i32, i32, i32) {
    %c0_i32 = arith.constant 0 : i32
    %c0_i32_0 = arith.constant 0 : i32
    %c0_i32_1 = arith.constant 0 : i32
    return %arg0, %c0_i32, %c0_i32_0 : i32, i32, i32
  }
  func.func @transform_2(%arg0: i32, %arg1: i32) -> (i32, i32) {
    %c0_i32 = arith.constant 0 : i32
    %c0_i32_0 = arith.constant 0 : i32
    return %arg1, %c0_i32 : i32, i32
  }
  func.func @transform_3(%arg0: i32, %arg1: i32) -> (i32, i32, i32) {
    %c0_i32 = arith.constant 0 : i32
    %c0_i32_0 = arith.constant 0 : i32
    return %arg0, %arg1, %c0_i32 : i32, i32, i32
  }
}

</mosaic_0001>

<llo_original>
// kernel: tpu_custom_call.1
$region0: #{tpu_custom_call.1}
  #allocation0 [shape = 'u32[]', space=smem, size = 0x4, offset = 0x4, fixed_abs, tag = 'smem constant byte address 0x4 - core index']
  #allocation1 [shape = 'u32[144,128]{1,0:T(1,128)}', space=vmem, size = 0x12000, scoped, tag = 'internal scratch']
  %s0 = inlined_call_operand.hbm [shape: f32[2,8,32], index: 0, kind: input, shape index: {}]
  %s1 = inlined_call_operand.hbm [shape: f32[2,1,8], index: 1, kind: input, shape index: {}]
  %s2 = inlined_call_operand.hbm [shape: f32[4,32], index: 2, kind: input, shape index: {}]
  %s3 = inlined_call_operand.hbm [shape: f32[2,4,32], index: 3, kind: output, shape index: {}]
  %s4 = sld [smem:[#allocation0]]
  $region57: #{tpu_custom_call.1} parent=0
    _
  %s6 = ssub.s32 1, %s4
  %s7 = scalar_select 0, %s6, %s4
  $region1: #{tpu_custom_call.1} parent=0
    #allocation2 [shape = 'u8[8192]{0}', space=vmem, size = 0x2000, scoped, tag = 'input window, operand 0']
    #allocation3 [shape = 's32[2]{0}', space=sflag, size = 0x8, scoped, tag = 'scoped memory for tpu_custom_call.1']
    #allocation4 [shape = 's32[2]{0}', space=sflag, size = 0x8, scoped, tag = 'scoped memory for tpu_custom_call.1']
    #allocation5 [shape = 'u8[1024]{0}', space=vmem, size = 0x400, scoped, tag = 'input window, operand 1']
    #allocation6 [shape = 's32[2]{0}', space=sflag, size = 0x8, scoped, tag = 'scoped memory for tpu_custom_call.1']
    #allocation7 [shape = 'u8[2048]{0}', space=vmem, size = 0x800, scoped, tag = 'input window, operand 2, single buffered']
    #allocation8 [shape = 'u8[4096]{0}', space=vmem, size = 0x1000, scoped, tag = 'output window, operand 0']
    %8 = vsyncpa [#allocation3], 0
    %s9 = scalar_lea.sflag [#allocation3], 1
    %10 = vsyncpa %s9, 0
    %11 = vsyncpa [#allocation6], 0
    %s12 = scalar_lea.sflag [#allocation6], 1
    %13 = vsyncpa %s12, 0
    %14 = vsyncpa [#allocation4], 0
    %s15 = scalar_lea.sflag [#allocation4], 1
    %16 = vsyncpa %s15, 0
    loop: start=0, step=1, limit=4
    $region2: #{tpu_custom_call.1} parent=1 // loop_pre_header
      _
    $region3: #{tpu_custom_call.1} parent=1 // loop_header
      %s18 = sphi 0, %s22
      %p19 = scmp.ge.s32.totalorder %s18, 4
      %s25 = sphi 0, %s37
      %s26 = sphi 0, %s33
      %s27 = sphi 0, %s25
      %s28 = sphi 0, %s26
      %s29 = sphi 0, %s27
      %s30 = sphi 0, %s28
      %s40 = sphi 0, %s42
      %s43 = sphi 0, %s40
      %s44 = sphi 0, %s43
      %s60 = sphi 0, %s44
      %s66 = sphi 0, %s68
      %s69 = sphi 0, %s66
      %s70 = sphi 0, %s69
      %s86 = sphi 0, %s70
      %s92 = sphi 0, %s94
      %s95 = sphi 0, %s92
      %s96 = sphi 0, %s95
      %s112 = sphi 0, %s96
      %s120 = sphi 0, %s122
      %s123 = sphi 0, %s120
      %s124 = sphi 0, %s123
      %s140 = sphi 0, %s124
    $region4: #{tpu_custom_call.1} parent=1 // loop_header_branch
      %21 = sbr.rel (%p19) target = $region8
    $region5: #{tpu_custom_call.1} parent=1 // loop_body
      %s23 = ssub.s32 %s18, 1
      %s24 = ssub.s32 %s18, 2
      %s31 = sadd.s32 1, %s26
      %p32 = scmp.ge.s32.totalorder %s31, 1
      %s33 = scalar_select %p32, 0, %s31
      %s34 = sadd.s32 1, %s25
      %s35 = scalar_select %p32, %s34, %s25
      %p36 = scmp.ge.s32.totalorder %s35, 2
      %s37 = scalar_select %p36, 0, %s35
      %s38 = ssub.s32 %s25, %s37
      %p39 = scmp.eq.s32.totalorder %s38, 0
      %s41 = sadd.s32 %s40, 1
      %s42 = scalar_select %p39, %s40, %s41
      %p45 = pneg %p39
      %p46 = scmp.eq.s32.totalorder %s18, 1
      %p47 = por %p45, %p46
      %p48 = scmp.ne.s32.totalorder %s40, %s43
      %p49 = scmp.eq.s32.totalorder %s18, 0
      %p50 = por %p48, %p49
      %p51 = scmp.ne.s32.totalorder %s40, %s43
      %p52 = scmp.eq.s32.totalorder %s23, 1
      %p53 = por %p51, %p52
      %p54 = scmp.ne.s32.totalorder %s43, %s44
      %p55 = scmp.eq.s32.totalorder %s23, 0
      %p56 = por %p54, %p55
      %p57 = scmp.ne.s32.totalorder %s43, %s44
      %p58 = scmp.eq.s32.totalorder %s24, 1
      %p59 = por %p57, %p58
      %p61 = scmp.ne.s32.totalorder %s44, %s60
      %p62 = scmp.eq.s32.totalorder %s24, 0
      %p63 = por %p61, %p62
      %s64 = ssub.s32 %s25, %s37
      %p65 = scmp.eq.s32.totalorder %s64, 0
      %s67 = sadd.s32 %s66, 1
      %s68 = scalar_select %p65, %s66, %s67
      %p71 = pneg %p65
      %p72 = scmp.eq.s32.totalorder %s18, 1
      %p73 = por %p71, %p72
      %p74 = scmp.ne.s32.totalorder %s66, %s69
      %p75 = scmp.eq.s32.totalorder %s18, 0
      %p76 = por %p74, %p75
      %p77 = scmp.ne.s32.totalorder %s66, %s69
      %p78 = scmp.eq.s32.totalorder %s23, 1
      %p79 = por %p77, %p78
      %p80 = scmp.ne.s32.totalorder %s69, %s70
      %p81 = scmp.eq.s32.totalorder %s23, 0
      %p82 = por %p80, %p81
      %p83 = scmp.ne.s32.totalorder %s69, %s70
      %p84 = scmp.eq.s32.totalorder %s24, 1
      %p85 = por %p83, %p84
      %p87 = scmp.ne.s32.totalorder %s70, %s86
      %p88 = scmp.eq.s32.totalorder %s24, 0
      %p89 = por %p87, %p88
      %s90 = ssub.s32 %s26, %s33
      %p91 = scmp.eq.s32.totalorder %s90, 0
      %s93 = sadd.s32 %s92, 1
      %s94 = scalar_select %p91, %s92, %s93
      %p97 = pneg %p91
      %p98 = scmp.eq.s32.totalorder %s18, 1
      %p99 = por %p97, %p98
      %p100 = scmp.ne.s32.totalorder %s92, %s95
      %p101 = scmp.eq.s32.totalorder %s18, 0
      %p102 = por %p100, %p101
      %p103 = scmp.ne.s32.totalorder %s92, %s95
      %p104 = scmp.eq.s32.totalorder %s23, 1
      %p105 = por %p103, %p104
      %p106 = scmp.ne.s32.totalorder %s95, %s96
      %p107 = scmp.eq.s32.totalorder %s23, 0
      %p108 = por %p106, %p107
      %p109 = scmp.ne.s32.totalorder %s95, %s96
      %p110 = scmp.eq.s32.totalorder %s24, 1
      %p111 = por %p109, %p110
      %p113 = scmp.ne.s32.totalorder %s96, %s112
      %p114 = scmp.eq.s32.totalorder %s24, 0
      %p115 = por %p113, %p114
      %s116 = ssub.s32 %s25, %s37
      %s117 = ssub.s32 %s26, %s33
      %s118 = sor.u32 %s116, %s117
      %p119 = scmp.eq.s32.totalorder %s118, 0
      %s121 = sadd.s32 %s120, 1
      %s122 = scalar_select %p119, %s120, %s121
      %p125 = pneg %p119
      %p126 = scmp.eq.s32.totalorder %s18, 1
      %p127 = por %p125, %p126
      %p128 = scmp.ne.s32.totalorder %s120, %s123
      %p129 = scmp.eq.s32.totalorder %s18, 0
      %p130 = por %p128, %p129
      %p131 = scmp.ne.s32.totalorder %s120, %s123
      %p132 = scmp.eq.s32.totalorder %s23, 1
      %p133 = por %p131, %p132
      %p134 = scmp.ne.s32.totalorder %s123, %s124
      %p135 = scmp.eq.s32.totalorder %s23, 0
      %p136 = por %p134, %p135
      %p137 = scmp.ne.s32.totalorder %s123, %s124
      %p138 = scmp.eq.s32.totalorder %s24, 1
      %p139 = por %p137, %p138
      %p141 = scmp.ne.s32.totalorder %s124, %s140
      %p142 = scmp.eq.s32.totalorder %s24, 0
      %p143 = por %p141, %p142
      %p144 = scmp.le.s32.totalorder 1, %s18
      %p145 = scmp.lt.s32.totalorder %s18, 3
      %p146 = pnand %p144, %p145
      %p147 = pneg %p146
      // Predicated region
      $region9: #{tpu_custom_call.1} parent=5 // pred_check
        _
      $region10: #{tpu_custom_call.1} parent=5 // pred_check_branch
        %149 = sbr.rel (%p146) target = $region12
      $region11: #{tpu_custom_call.1} parent=5 // pred_region
        %s150 = ssub.s32 %s18, 1
        // Predicated region
        $region13: #{tpu_custom_call.1} parent=11 // pred_check
          %p151 = pneg %p108
        $region14: #{tpu_custom_call.1} parent=11 // pred_check_branch
          %153 = sbr.rel (%p151) target = $region16
        $region15: #{tpu_custom_call.1} parent=11 // pred_region
          %s155 = ssub.s32 64, 64
          %156 = vsyncadd [#allocation6], %s155
          %s157 = smul.addr %s28, 64
          %s158 = scalar_lea.hbm %s2, %s157
          %s160 = sshll.u32 [#allocation7], 4
          %s161 = int_to_ptr.vmem [resolvable:$true] %s160
          %163 = dma.hbm_to_vmem [thread:$0]  %s158, 64, %s161, [#allocation6]
        $region16: #{tpu_custom_call.1} parent=11 // pred_fallthru
          _
      $region12: #{tpu_custom_call.1} parent=5 // pred_fallthru
        _
      %p164 = scmp.lt.s32.totalorder %s18, 2
      // Predicated region
      $region17: #{tpu_custom_call.1} parent=5 // pred_check
        %p165 = pneg %p164
      $region18: #{tpu_custom_call.1} parent=5 // pred_check_branch
        %167 = sbr.rel (%p165) target = $region20
      $region19: #{tpu_custom_call.1} parent=5 // pred_region
        // Predicated region
        $region21: #{tpu_custom_call.1} parent=19 // pred_check
          %p168 = pneg %p50
        $region22: #{tpu_custom_call.1} parent=19 // pred_check_branch
          %170 = sbr.rel (%p168) target = $region24
        $region23: #{tpu_custom_call.1} parent=19 // pred_region
          %s171 = sand.u32 %s40, 1
          %s172 = scalar_lea.sflag [#allocation3], %s171
          %s173 = sand.u32 %s40, 1
          %s174 = smul.addr %s173, 8
          %s175 = scalar_lea.vmem [#allocation2], %s174
          %s177 = ssub.s32 128, 128
          %178 = vsyncadd %s172, %s177
          %s179 = smul.addr %s25, 128
          %s180 = scalar_lea.hbm %s0, %s179
          %s182 = sshll.u32 %s175, 4
          %s183 = int_to_ptr.vmem [resolvable:$true] %s182
          %185 = dma.hbm_to_vmem [thread:$0]  %s180, 128, %s183, %s172
        $region24: #{tpu_custom_call.1} parent=19 // pred_fallthru
          _
        // Predicated region
        $region25: #{tpu_custom_call.1} parent=19 // pred_check
          %p186 = pneg %p76
        $region26: #{tpu_custom_call.1} parent=19 // pred_check_branch
          %188 = sbr.rel (%p186) target = $region28
        $region27: #{tpu_custom_call.1} parent=19 // pred_region
          %s189 = sand.u32 %s18, 1
          %s190 = scalar_lea.sflag [#allocation6], %s189
          %s191 = sand.u32 %s66, 1
          %s192 = scalar_lea.vmem [#allocation5], %s191
          %s194 = ssub.s32 16, 16
          %195 = vsyncadd %s190, %s194
          %s196 = smul.addr %s25, 16
          %s197 = scalar_lea.hbm %s1, %s196
          %s199 = sshll.u32 %s192, 4
          %s200 = int_to_ptr.vmem [resolvable:$true] %s199
          %202 = dma.hbm_to_vmem [thread:$0]  %s197, 16, %s200, %s190
        $region28: #{tpu_custom_call.1} parent=19 // pred_fallthru
          _
      $region20: #{tpu_custom_call.1} parent=5 // pred_fallthru
        _
      %p203 = scmp.le.s32.totalorder 1, %s18
      %p204 = scmp.lt.s32.totalorder %s18, 3
      %p205 = pnand %p203, %p204
      %p206 = pneg %p205
      // Predicated region
      $region29: #{tpu_custom_call.1} parent=5 // pred_check
        _
      $region30: #{tpu_custom_call.1} parent=5 // pred_check_branch
        %208 = sbr.rel (%p205) target = $region32
      $region31: #{tpu_custom_call.1} parent=5 // pred_region
        %s209 = ssub.s32 %s18, 1
        %s210 = sand.u32 %s43, 1
        %s211 = scalar_lea.sflag [#allocation3], %s210
        %s212 = sand.u32 %s43, 1
        %s213 = smul.addr %s212, 8
        %s214 = scalar_lea.vmem [#allocation2], %s213
        // Predicated region
        $region33: #{tpu_custom_call.1} parent=31 // pred_check
          %p215 = pneg %p56
        $region34: #{tpu_custom_call.1} parent=31 // pred_check_branch
          %217 = sbr.rel (%p215) target = $region36
        $region35: #{tpu_custom_call.1} parent=31 // pred_region
          %218 = dma.done %s211, 128
        $region36: #{tpu_custom_call.1} parent=31 // pred_fallthru
          _
        %s219 = sand.u32 %s23, 1
        %s220 = scalar_lea.sflag [#allocation6], %s219
        %s221 = sand.u32 %s69, 1
        %s222 = scalar_lea.vmem [#allocation5], %s221
        // Predicated region
        $region37: #{tpu_custom_call.1} parent=31 // pred_check
          %p223 = pneg %p82
        $region38: #{tpu_custom_call.1} parent=31 // pred_check_branch
          %225 = sbr.rel (%p223) target = $region40
        $region39: #{tpu_custom_call.1} parent=31 // pred_region
          %226 = dma.done %s220, 16
        $region40: #{tpu_custom_call.1} parent=31 // pred_fallthru
          _
        // Predicated region
        $region41: #{tpu_custom_call.1} parent=31 // pred_check
          %p227 = pneg %p108
        $region42: #{tpu_custom_call.1} parent=31 // pred_check_branch
          %229 = sbr.rel (%p227) target = $region44
        $region43: #{tpu_custom_call.1} parent=31 // pred_region
          %230 = dma.done [#allocation6], 64
        $region44: #{tpu_custom_call.1} parent=31 // pred_fallthru
          _
        %s231 = sand.u32 %s43, 1
        %s232 = scalar_lea.sflag [#allocation3], %s231
        %s233 = sand.u32 %s43, 1
        %s234 = smul.addr %s233, 8
        %s235 = scalar_lea.vmem [#allocation2], %s234
        %p236 = pneg %p56
        %p237 = pneg %p53
        %s238 = sand.u32 %s23, 1
        %s239 = scalar_lea.sflag [#allocation6], %s238
        %s240 = sand.u32 %s69, 1
        %s241 = scalar_lea.vmem [#allocation5], %s240
        %p242 = pneg %p82
        %p243 = pneg %p79
        %p244 = pneg %p108
        %p245 = pneg %p105
        %p246 = pneg %p136
        %p247 = pneg %p133
        %s248 = sand.u32 %s123, 1
        %s249 = scalar_lea.sflag [#allocation4], %s248
        %s250 = sand.u32 %s123, 1
        %s251 = smul.addr %s250, 4
        %s252 = scalar_lea.vmem [#allocation8], %s251
        %v253 = vld [vmem:[#allocation7] sm:$0xf]
        %v254 = vld [vmem:[%s214] sm:$0xff]
        %vm255 = vcmask 261120
        %v257 = vsel %vm255, %v253, 0
        %v260 = vsel %vm255, %v254, 0
        %262 = vmatprep.subr.mxu0 0.0
        %263 = vmatpush1.xpose.msra.mxu0 0.0
        %264 = vmatprep.subr.mxu0 0.0
        %265 = vmatpush1.xpose.msra.mxu0 0.0
        %266 = vmatprep.subr.mxu0 0.0
        %267 = vmatpush1.xpose.msra.mxu0 0.0
        %268 = vmatprep.subr.mxu0 0.0
        %269 = vmatpush1.xpose.msra.mxu0 0.0
        %270 = vmatprep.subr.mxu0 0.0
        %271 = vmatpush1.xpose.msra.mxu0 0.0
        %272 = vmatprep.subr.mxu0 0.0
        %273 = vmatpush1.xpose.msra.mxu0 0.0
        %274 = vmatprep.subr.mxu0 0.0
        %275 = vmatpush1.xpose.msra.mxu0 0.0
        %276 = vmatprep.subr.mxu0 0.0
        %277 = vmatpush1.xpose.msra.mxu0 0.0
        %278 = vmatprep.subr.mxu0 0.0
        %279 = vmatpush1.xpose.msra.mxu0 0.0
        %280 = vmatprep.subr.mxu0 0.0
        %281 = vmatpush1.xpose.msra.mxu0 0.0
        %282 = vmatprep.subr.mxu0 0.0
        %283 = vmatpush1.xpose.msra.mxu0 0.0
        %284 = vmatprep.subr.mxu0 0.0
        %285 = vmatpush1.xpose.msra.mxu0 0.0
        %286 = vmatprep.subr.mxu0 0.0
        %287 = vmatpush1.xpose.msra.mxu0 0.0
        %288 = vmatprep.subr.mxu0 0.0
        %289 = vmatpush1.xpose.msra.mxu0 0.0
        %290 = vmatprep.subr.mxu0 0.0
        %291 = vmatpush1.xpose.msra.mxu0 0.0
        %292 = vmatprep.subr.mxu0 0.0
        %293 = vmatpush1.xpose.msra.mxu0 %v260
        %294 = vmatprep.subr.mxu0 0.0
        %295 = vmatpush2.xpose.msra.mxu0 0.0
        %296 = vmatprep.subr.mxu0 0.0
        %297 = vmatpush2.xpose.msra.mxu0 0.0
        %298 = vmatprep.subr.mxu0 0.0
        %299 = vmatpush2.xpose.msra.mxu0 0.0
        %300 = vmatprep.subr.mxu0 0.0
        %301 = vmatpush2.xpose.msra.mxu0 0.0
        %302 = vmatprep.subr.mxu0 0.0
        %303 = vmatpush2.xpose.msra.mxu0 0.0
        %304 = vmatprep.subr.mxu0 0.0
        %305 = vmatpush2.xpose.msra.mxu0 0.0
        %306 = vmatprep.subr.mxu0 0.0
        %307 = vmatpush2.xpose.msra.mxu0 0.0
        %308 = vmatprep.subr.mxu0 0.0
        %309 = vmatpush2.xpose.msra.mxu0 0.0
        %310 = vmatprep.subr.mxu0 0.0
        %311 = vmatpush2.xpose.msra.mxu0 0.0
        %312 = vmatprep.subr.mxu0 0.0
        %313 = vmatpush2.xpose.msra.mxu0 0.0
        %314 = vmatprep.subr.mxu0 0.0
        %315 = vmatpush2.xpose.msra.mxu0 0.0
        %316 = vmatprep.subr.mxu0 0.0
        %317 = vmatpush2.xpose.msra.mxu0 0.0
        %318 = vmatprep.subr.mxu0 0.0
        %319 = vmatpush2.xpose.msra.mxu0 0.0
        %320 = vmatprep.subr.mxu0 0.0
        %321 = vmatpush2.xpose.msra.mxu0 0.0
        %322 = vmatprep.subr.mxu0 0.0
        %323 = vmatpush2.xpose.msra.mxu0 0.0
        %324 = vmatprep.subr.mxu0 0.0
        %325 = vmatpush2.xpose.msra.mxu0 0.0
        %326 = vmatprep.mubr.f32.mxu0 0.0
        %327 = vmatmul.mubr.f32.gmra.mxu0 %v257
        %v328 = vpop.f32.mrf.mxu0
        %v329 = vadd.f32 0.0, %v328
        %v330 = vpop.f32.mrf.mxu0
        %331 = vdwg.mxu0
        %v332 = vld [vmem:[%s222] sm:$0x1]
        %vm333 = vcmp.gt.f32.partialorder %v332, 0.0
        %v334 = vsel %vm333, 1, 0
        %v335 = vlaneseq
        %v336 = vshrl.u32 %v335, 7
        %v337 = vsub.s32 0, %v336
        %v338 = vrot.slane %v334, %v337
        %vm339 = vcmp.eq.s32.totalorder %v338, 1
        %v340 = vsel %vm339, %v329, -inf
        %vm341 = vcmask 60416
        %v342 = vsel %vm341, %v340, -inf
        %343 = vmax.xlane.f32.xlu0 %v342
        %v344 = vpop.xlane.xlu0 %343
        %v345 = vsub.f32 %v340, %v344
        %v346 = vmul.f32 %v345, 1.442695
        %v347 = vpow.pop %v346
        %v348 = vsel %vm341, %v347, 0.0
        %349 = vadd.xlane.f32.xlu0 %v348
        %v350 = vpop.xlane.xlu0 %349
        %v351 = vrcp.pop %v350
        %v352 = vmul.f32 %v347, %v351
        %vm353 = vcmask 64512
        %v355 = vsel %vm353, %v352, 0
        %357 = vmatprep.subr.mxu0 0.0
        %358 = vmatpush1.msra.mxu0 0.0
        %359 = vmatprep.subr.mxu0 0.0
        %360 = vmatpush1.msra.mxu0 0.0
        %361 = vmatprep.subr.mxu0 0.0
        %362 = vmatpush1.msra.mxu0 0.0
        %363 = vmatprep.subr.mxu0 0.0
        %364 = vmatpush1.msra.mxu0 0.0
        %365 = vmatprep.subr.mxu0 0.0
        %366 = vmatpush1.msra.mxu0 0.0
        %367 = vmatprep.subr.mxu0 0.0
        %368 = vmatpush1.msra.mxu0 0.0
        %369 = vmatprep.subr.mxu0 0.0
        %370 = vmatpush1.msra.mxu0 0.0
        %371 = vmatprep.subr.mxu0 0.0
        %372 = vmatpush1.msra.mxu0 0.0
        %373 = vmatprep.subr.mxu0 0.0
        %374 = vmatpush1.msra.mxu0 0.0
        %375 = vmatprep.subr.mxu0 0.0
        %376 = vmatpush1.msra.mxu0 0.0
        %377 = vmatprep.subr.mxu0 0.0
        %378 = vmatpush1.msra.mxu0 0.0
        %379 = vmatprep.subr.mxu0 0.0
        %380 = vmatpush1.msra.mxu0 0.0
        %381 = vmatprep.subr.mxu0 0.0
        %382 = vmatpush1.msra.mxu0 0.0
        %383 = vmatprep.subr.mxu0 0.0
        %384 = vmatpush1.msra.mxu0 0.0
        %385 = vmatprep.subr.mxu0 0.0
        %386 = vmatpush1.msra.mxu0 0.0
        %387 = vmatprep.subr.mxu0 0.0
        %388 = vmatpush1.msra.mxu0 %v254
        %389 = vmatprep.subr.mxu0 0.0
        %390 = vmatpush2.msra.mxu0 0.0
        %391 = vmatprep.subr.mxu0 0.0
        %392 = vmatpush2.msra.mxu0 0.0
        %393 = vmatprep.subr.mxu0 0.0
        %394 = vmatpush2.msra.mxu0 0.0
        %395 = vmatprep.subr.mxu0 0.0
        %396 = vmatpush2.msra.mxu0 0.0
        %397 = vmatprep.subr.mxu0 0.0
        %398 = vmatpush2.msra.mxu0 0.0
        %399 = vmatprep.subr.mxu0 0.0
        %400 = vmatpush2.msra.mxu0 0.0
        %401 = vmatprep.subr.mxu0 0.0
        %402 = vmatpush2.msra.mxu0 0.0
        %403 = vmatprep.subr.mxu0 0.0
        %404 = vmatpush2.msra.mxu0 0.0
        %405 = vmatprep.subr.mxu0 0.0
        %406 = vmatpush2.msra.mxu0 0.0
        %407 = vmatprep.subr.mxu0 0.0
        %408 = vmatpush2.msra.mxu0 0.0
        %409 = vmatprep.subr.mxu0 0.0
        %410 = vmatpush2.msra.mxu0 0.0
        %411 = vmatprep.subr.mxu0 0.0
        %412 = vmatpush2.msra.mxu0 0.0
        %413 = vmatprep.subr.mxu0 0.0
        %414 = vmatpush2.msra.mxu0 0.0
        %415 = vmatprep.subr.mxu0 0.0
        %416 = vmatpush2.msra.mxu0 0.0
        %417 = vmatprep.subr.mxu0 0.0
        %418 = vmatpush2.msra.mxu0 0.0
        %419 = vmatprep.subr.mxu0 0.0
        %420 = vmatpush2.msra.mxu0 0.0
        %421 = vmatprep.mubr.f32.mxu0 0.0
        %422 = vmatmul.mubr.f32.gmra.mxu0 %v355
        %v423 = vpop.f32.mrf.mxu0
        %v424 = vadd.f32 0.0, %v423
        %v425 = vpop.f32.mrf.mxu0
        %426 = vdwg.mxu0
        %vm427 = vcmask 257024
        %428 = vst.msk [vmem:[%s252] sm:$0xf] %vm427, %v424
        %s429 = sand.u32 %s123, 1
        %s430 = scalar_lea.sflag [#allocation4], %s429
        %s431 = sand.u32 %s123, 1
        %s432 = smul.addr %s431, 4
        %s433 = scalar_lea.vmem [#allocation8], %s432
        // Predicated region
        $region45: #{tpu_custom_call.1} parent=31 // pred_check
          %p434 = pneg %p133
        $region46: #{tpu_custom_call.1} parent=31 // pred_check_branch
          %436 = sbr.rel (%p434) target = $region48
        $region47: #{tpu_custom_call.1} parent=31 // pred_region
          %s438 = ssub.s32 64, 64
          %439 = vsyncadd %s430, %s438
          %s440 = sadd.s32 %s28, %s27
          %s441 = smul.addr %s440, 64
          %s442 = scalar_lea.hbm %s3, %s441
          %s444 = sshll.u32 %s433, 4
          %s445 = int_to_ptr.vmem [resolvable:$true] %s444
          %447 = dma.vmem_to_hbm [thread:$0]  %s445, 64, %s442, %s430
        $region48: #{tpu_custom_call.1} parent=31 // pred_fallthru
          _
      $region32: #{tpu_custom_call.1} parent=5 // pred_fallthru
        _
      %p448 = scmp.le.s32.totalorder 2, %s18
      // Predicated region
      $region49: #{tpu_custom_call.1} parent=5 // pred_check
        %p449 = pneg %p448
      $region50: #{tpu_custom_call.1} parent=5 // pred_check_branch
        %451 = sbr.rel (%p449) target = $region52
      $region51: #{tpu_custom_call.1} parent=5 // pred_region
        %s452 = ssub.s32 %s18, 2
        // Predicated region
        $region53: #{tpu_custom_call.1} parent=51 // pred_check
          %p453 = pneg %p139
        $region54: #{tpu_custom_call.1} parent=51 // pred_check_branch
          %455 = sbr.rel (%p453) target = $region56
        $region55: #{tpu_custom_call.1} parent=51 // pred_region
          %s456 = sand.u32 %s124, 1
          %s457 = scalar_lea.sflag [#allocation4], %s456
          %s458 = sand.u32 %s124, 1
          %s459 = smul.addr %s458, 4
          %s460 = scalar_lea.vmem [#allocation8], %s459
          %461 = dma.done %s457, 64
        $region56: #{tpu_custom_call.1} parent=51 // pred_fallthru
          _
      $region52: #{tpu_custom_call.1} parent=5 // pred_fallthru
        _
    $region6: #{tpu_custom_call.1} parent=1 // loop_footer
      %s22 = sadd.s32 1, %s18
    $region7: #{tpu_custom_call.1} parent=1 // loop_footer_branch
      %17 = sbr.rel target = $region3
    $region8: #{tpu_custom_call.1} parent=1 // loop_exit
      _
    %462 = vsyncpa [#allocation3], 1
    %s463 = scalar_lea.sflag [#allocation3], 1
    %464 = vsyncpa %s463, 1
    %465 = vsyncpa [#allocation6], 1
    %s466 = scalar_lea.sflag [#allocation6], 1
    %467 = vsyncpa %s466, 1
    %468 = vsyncpa [#allocation4], 1
    %s469 = scalar_lea.sflag [#allocation4], 1
    %470 = vsyncpa %s469, 1

</llo_original>
